<compile_context>
chip_gen: v6e
topology: v6e:2x2x1
jax: 0.10.0
libtpu: 0.0.40
codegen_flags: <defaults>
</compile_context>

<pallas_src>
import functools
import math

import jax
import jax.numpy as jnp
from jax.experimental import pallas as pl
from jax.experimental.pallas import tpu as pltpu

E = math.e
LN10 = math.log(10.0)


# ------------------------------------------------------------ in-kernel helpers

def _neighbor_masks(nbr, num_atoms):
    """masks[k][b, i, j] = (nbr[b, i, j] == k). Shared by all gathers in a kernel."""
    return [nbr == k for k in range(num_atoms)]


def _gather_with_masks(masks, *vals):
    """VPU select-accumulate gather.

    vals[t]: (Bt, A, 1).  result[t][b, i, j] = vals[t][b, nbr[b, i, j], 0].
    One compare (reused via `masks`) + one select per value per atom index;
    no MXU / XLU round-trips.
    """
    outs = [jnp.zeros(masks[0].shape, jnp.float32) for _ in vals]
    for k, m in enumerate(masks):
        for t, v in enumerate(vals):
            outs[t] = jnp.where(m, v[:, k:k + 1, :], outs[t])
    return tuple(outs)


def _dist_edit(nbr, z, logz):
    """exp(-0.05*e * (z*z_nbh)^1.01 / (z+z_nbh)^1.1) in log space (z > 0).

    Gathers z and log(z) with shared masks so only log(z + z_nbh) remains
    per-element: 1 log + 2 exps per element.
    """
    masks = _neighbor_masks(nbr, z.shape[1])
    z_nbh, logz_nbh = _gather_with_masks(masks, z, logz)
    inner = jnp.exp(1.01 * (logz + logz_nbh) - 1.1 * jnp.log(z + z_nbh))
    return jnp.exp((-0.05 * E) * inner)


# ---------------------------------------------------------------------- kernels

def _ran_direct_kernel(nbr_ref, z_ref, rij_ref, out_ref):
    z = z_ref[...]
    de = _dist_edit(nbr_ref[...], z, jnp.log(z))
    out_ref[...] = rij_ref[...] + de


def _ran_sumbatch_kernel(nbr_ref, z_ref, rij_ref, out_ref, desum_ref):
    z = z_ref[...]
    de = _dist_edit(nbr_ref[...], z, jnp.log(z))
    out_ref[...] = rij_ref[...] + de
    # Per-molecule partial sums only -- the full dist_edit tensor never hits HBM.
    desum_ref[...] = jnp.sum(jnp.sum(de, axis=2, keepdims=True), axis=1, keepdims=True)


def _ran_summolecule_kernel(nbr_ref, z_ref, rij_ref, out_ref, *, wsum, bsum):
    z = z_ref[...]
    de = _dist_edit(nbr_ref[...], z, jnp.log(z))
    # Linear(1,10) + sum collapses to s*sum(w) + sum(b); fuse fully in-kernel.
    s = jnp.sum(jnp.sum(de, axis=2, keepdims=True), axis=1, keepdims=True)   # (Bt,1,1)
    am = jnp.exp(-0.005 * (s * wsum + bsum))
    out_ref[...] = rij_ref[...] + de + am


def _rane_kernel(nbr_ref, z_ref, rij_ref, out_ref):
    nbr = nbr_ref[...]
    z = z_ref[...]
    rij = rij_ref[...]
    masks = _neighbor_masks(nbr, z.shape[1])          # reused by both gathers

    (z_nbh,) = _gather_with_masks(masks, z)
    atom_mod = z * (z_nbh + 0.01 * rij)
    amp = jnp.where(atom_mod == 0.0, 1.0, atom_mod)   # torch: zeros -> 1 in the product
    # Product over neighbors as a lane-axis sum of logs (single XLU reduce,
    # no serial per-lane multiply chain, no overflow of the raw product).
    log_prod = jnp.sum(jnp.log(amp), axis=2, keepdims=True)       # (Bt, A, 1)
    ssum = jnp.sum(atom_mod, axis=2, keepdims=True)               # (Bt, A, 1)
    dist1 = jnp.exp((-0.01 * E / LN10) * (1.01 * log_prod - 1.1 * jnp.log(ssum)))

    zp = z + dist1                                    # updated atom_num_exp
    logzp = jnp.log(zp)
    zp_nbh, logzp_nbh = _gather_with_masks(masks, zp, logzp)
    inner2 = jnp.exp(1.01 * (logzp + logzp_nbh) - 1.1 * jnp.log(zp + zp_nbh))
    out_ref[...] = rij + jnp.exp(-0.4 * jnp.exp(inner2))


# ------------------------------------------------------------------ pallas glue

def _choose_bt(B, A, N):
    # Amortize per-grid-step overhead by packing molecules per block, but keep
    # >= 2 grid steps when B >= 2 (v7x dual-TensorCore) and keep the
    # double-buffered block footprint tiny vs v7x's 64 MiB VMEM.
    bytes_per_mol = (3 * A * N + A) * 4
    bt = max(1, min(B, (512 * 1024) // max(bytes_per_mol, 1)))
    if B >= 2:
        bt = min(bt, max(1, B // 2))
    return bt


def _pad_batch(x, b_pad, fill):
    b = x.shape[0]
    if b_pad == b:
        return x
    widths = [(0, b_pad - b)] + [(0, 0)] * (x.ndim - 1)
    return jnp.pad(x, widths, constant_values=fill)


def _prep(atomic_numbers, neighbors, r_ij):
    B, A = atomic_numbers.shape
    N = neighbors.shape[2]
    bt = _choose_bt(B, A, N)
    G = -(-B // bt)
    b_pad = G * bt
    # Pad with benign values (z=1, nbr=0, rij=1) so the log-space math stays
    # finite; padded molecules are sliced away afterwards.
    z = _pad_batch(atomic_numbers.astype(jnp.float32).reshape(B, A, 1), b_pad, 1.0)
    nbr = _pad_batch(neighbors.astype(jnp.int32), b_pad, 0)
    rij = _pad_batch(r_ij.astype(jnp.float32), b_pad, 1.0)
    return z, nbr, rij, bt, G, b_pad, A, N


def _big_spec(bt, A, N):
    return pl.BlockSpec((bt, A, N), lambda g: (g, 0, 0))


def _z_spec(bt, A):
    return pl.BlockSpec((bt, A, 1), lambda g: (g, 0, 0))


def _run_elementwise(kernel, atomic_numbers, neighbors, r_ij):
    B = atomic_numbers.shape[0]
    z, nbr, rij, bt, G, b_pad, A, N = _prep(atomic_numbers, neighbors, r_ij)
    out = pl.pallas_call(
        kernel,
        out_shape=jax.ShapeDtypeStruct((b_pad, A, N), jnp.float32),
        grid=(G,),
        in_specs=[_big_spec(bt, A, N), _z_spec(bt, A), _big_spec(bt, A, N)],
        out_specs=_big_spec(bt, A, N),
        compiler_params=pltpu.CompilerParams(dimension_semantics=("parallel",)),
    )(nbr, z, rij)
    return out[:B]


def _run_direct(atomic_numbers, neighbors, r_ij):
    return _run_elementwise(_ran_direct_kernel, atomic_numbers, neighbors, r_ij)


def _run_summolecule(atomic_numbers, neighbors, r_ij, wsum, bsum):
    kernel = functools.partial(_ran_summolecule_kernel, wsum=wsum, bsum=bsum)
    return _run_elementwise(kernel, atomic_numbers, neighbors, r_ij)


def _run_rane(atomic_numbers, neighbors, r_ij):
    return _run_elementwise(_rane_kernel, atomic_numbers, neighbors, r_ij)


def _run_sumbatch(atomic_numbers, neighbors, r_ij, wsum, bsum):
    B = atomic_numbers.shape[0]
    z, nbr, rij, bt, G, b_pad, A, N = _prep(atomic_numbers, neighbors, r_ij)
    out, desum = pl.pallas_call(
        _ran_sumbatch_kernel,
        out_shape=(jax.ShapeDtypeStruct((b_pad, A, N), jnp.float32),
                   jax.ShapeDtypeStruct((b_pad, 1, 1), jnp.float32)),
        grid=(G,),
        in_specs=[_big_spec(bt, A, N), _z_spec(bt, A), _big_spec(bt, A, N)],
        out_specs=(_big_spec(bt, A, N),
                   pl.BlockSpec((bt, 1, 1), lambda g: (g, 0, 0))),
        compiler_params=pltpu.CompilerParams(dimension_semantics=("parallel",)),
    )(nbr, z, rij)
    s = jnp.sum(desum[:B])                       # global batch sum, real molecules only
    am = jnp.exp(-0.005 * (s * wsum + bsum))
    # TODO(synk): the global-batch scalar `am` still needs one elementwise XLA add
    # over `out`; fusing it would require a second (tiny) kernel pass.
    return out[:B] + am


class RAN:
    """JAX/Pallas port of the torch RAN module."""

    def __init__(self, type: str = 'direct_ran'):
        self.type = type
        if self.type in ('sumbatch_ran', 'summolecule_ran'):
            # Linear(1, 10): deterministic synthetic init (weight (10,1), bias (10,))
            k1, k2 = jax.random.split(jax.random.PRNGKey(1))
            self.w = jax.random.uniform(k1, (10, 1), jnp.float32, -1.0, 1.0)
            self.b = jax.random.uniform(k2, (10,), jnp.float32, -1.0, 1.0)
            # Linear(1,10) followed by a sum collapses to s*sum(w) + sum(b).
            self.wsum = float(jnp.sum(self.w))
            self.bsum = float(jnp.sum(self.b))

    def __call__(self, atomic_numbers, neighbors, r_ij):
        if self.type == 'direct_ran':
            return _run_direct(atomic_numbers, neighbors, r_ij)
        if self.type == 'sumbatch_ran':
            return _run_sumbatch(atomic_numbers, neighbors, r_ij, self.wsum, self.bsum)
        if self.type == 'summolecule_ran':
            return _run_summolecule(atomic_numbers, neighbors, r_ij, self.wsum, self.bsum)
        if self.type == 'rane':
            return _run_rane(atomic_numbers, neighbors, r_ij)
        raise ValueError(self.type)


# ---------------------------------------------------------- plain-JAX reference

def _ran_ref(z, nbr, rij, mode='direct', w=None, b=None):
    B, A = z.shape
    zc = z.reshape(B, A, 1)
    znbh = jnp.take_along_axis(jnp.broadcast_to(zc, (B, A, A)), nbr, axis=1)
    de = jnp.exp(-0.05 * E * jnp.power(zc * znbh, 1.01) / jnp.power(zc + znbh, 1.1))
    if mode == 'sumbatch':
        s = jnp.sum(de).reshape(-1, 1)
        am = s @ w.T + b
        am = jnp.exp(-0.005 * jnp.sum(am)).reshape(-1, 1, 1)
        de = de + am
    elif mode == 'summolecule':
        s = jnp.sum(de, axis=(1, 2)).reshape(B, 1)
        am = s @ w.T + b
        am = jnp.exp(-0.005 * jnp.sum(am, axis=1)).reshape(-1, 1, 1)
        de = de + am
    return rij + de


def _rane_ref(z, nbr, rij):
    B, A = z.shape
    zc = z.reshape(B, A, 1)
    znbh = jnp.take_along_axis(jnp.broadcast_to(zc, (B, A, A)), nbr, axis=1)
    atom_mod = zc * (znbh + rij * 0.01)
    amp = jnp.where(atom_mod == 0.0, 1.0, atom_mod)
    de = jnp.exp(-0.01 * E * jnp.log10(jnp.power(jnp.prod(amp, axis=2), 1.01)
                                       / jnp.power(jnp.sum(atom_mod, axis=2), 1.1)))
    zc2 = zc + de[..., None]
    znbh2 = jnp.take_along_axis(jnp.broadcast_to(zc2, (B, A, A)), nbr, axis=1)
    de2 = jnp.exp(-0.4 * jnp.exp(jnp.power(zc2 * znbh2, 1.01) / jnp.power(zc2 + znbh2, 1.1)))
    return rij + de2


# ------------------------------------------------------------------------- main

if __name__ == "__main__":
    key = jax.random.PRNGKey(0)
    B, A, N = 2, 8, 8
    k1, k2, k3 = jax.random.split(key, 3)
    atomic_numbers = jax.random.randint(k1, (B, A), 1, 10).astype(jnp.float32)
    neighbors = jax.random.randint(k2, (B, A, N), 0, A).astype(jnp.int32)
    r_ij = jax.random.uniform(k3, (B, A, N), jnp.float32, 0.5, 5.0)

    for t in ('direct_ran', 'sumbatch_ran', 'summolecule_ran', 'rane'):
        model = RAN(t)
        out = model(atomic_numbers, neighbors, r_ij)
        out = jax.block_until_ready(out)
        if t == 'rane':
            ref = _rane_ref(atomic_numbers, neighbors, r_ij)
        else:
            mode = {'direct_ran': 'direct', 'sumbatch_ran': 'sumbatch',
                    'summolecule_ran': 'summolecule'}[t]
            w = getattr(model, 'w', None)
            b = getattr(model, 'b', None)
            ref = _ran_ref(atomic_numbers, neighbors, r_ij, mode, w, b)
        assert out.shape == (B, A, N) and out.dtype == jnp.float32
        assert jnp.allclose(out, ref, rtol=1e-3, atol=1e-4), f"mismatch for type={t}"

    print("KERNEL_OK")
</pallas_src>

<mosaic_0001>
module attributes {stable_mosaic.version = 11 : i64} {
  func.func @_ran_direct_kernel(%arg0: i32, %arg1: memref<1x8x8xi32, #tpu.memory_space<vmem>>, %arg2: memref<1x8x1xf32, #tpu.memory_space<vmem>>, %arg3: memref<1x8x8xf32, #tpu.memory_space<vmem>>, %arg4: memref<1x8x8xf32, #tpu.memory_space<vmem>>) attributes {dimension_semantics = [#tpu.dimension_semantics<parallel>], iteration_bounds = array<i64: 2>, scalar_prefetch = 0 : i64, scratch_operands = 0 : i64, tpu.core_type = #tpu.core_type<tc>, window_params = [{transform_indices = @transform_0, window_bounds = array<i64: 1, 8, 8>}, {transform_indices = @transform_1, window_bounds = array<i64: 1, 8, 1>}, {transform_indices = @transform_2, window_bounds = array<i64: 1, 8, 8>}, {transform_indices = @transform_3, window_bounds = array<i64: 1, 8, 8>}]} {
    %c0 = arith.constant 0 : index
    %c0_0 = arith.constant 0 : index
    %c0_1 = arith.constant 0 : index
    %0 = vector.load %arg2[%c0, %c0_0, %c0_1] : memref<1x8x1xf32, #tpu.memory_space<vmem>>, vector<1x8x1xf32>
    %c0_2 = arith.constant 0 : index
    %c0_3 = arith.constant 0 : index
    %c0_4 = arith.constant 0 : index
    %1 = vector.load %arg1[%c0_2, %c0_3, %c0_4] : memref<1x8x8xi32, #tpu.memory_space<vmem>>, vector<1x8x8xi32>
    %2 = math.log %0 : vector<1x8x1xf32>
    %c0_i32 = arith.constant 0 : i32
    %3 = vector.broadcast %c0_i32 : i32 to vector<1x8x8xi32>
    %4 = arith.cmpi eq, %1, %3 : vector<1x8x8xi32>
    %c1_i32 = arith.constant 1 : i32
    %5 = vector.broadcast %c1_i32 : i32 to vector<1x8x8xi32>
    %6 = arith.cmpi eq, %1, %5 : vector<1x8x8xi32>
    %c2_i32 = arith.constant 2 : i32
    %7 = vector.broadcast %c2_i32 : i32 to vector<1x8x8xi32>
    %8 = arith.cmpi eq, %1, %7 : vector<1x8x8xi32>
    %c3_i32 = arith.constant 3 : i32
    %9 = vector.broadcast %c3_i32 : i32 to vector<1x8x8xi32>
    %10 = arith.cmpi eq, %1, %9 : vector<1x8x8xi32>
    %c4_i32 = arith.constant 4 : i32
    %11 = vector.broadcast %c4_i32 : i32 to vector<1x8x8xi32>
    %12 = arith.cmpi eq, %1, %11 : vector<1x8x8xi32>
    %c5_i32 = arith.constant 5 : i32
    %13 = vector.broadcast %c5_i32 : i32 to vector<1x8x8xi32>
    %14 = arith.cmpi eq, %1, %13 : vector<1x8x8xi32>
    %c6_i32 = arith.constant 6 : i32
    %15 = vector.broadcast %c6_i32 : i32 to vector<1x8x8xi32>
    %16 = arith.cmpi eq, %1, %15 : vector<1x8x8xi32>
    %c7_i32 = arith.constant 7 : i32
    %17 = vector.broadcast %c7_i32 : i32 to vector<1x8x8xi32>
    %18 = arith.cmpi eq, %1, %17 : vector<1x8x8xi32>
    %cst = arith.constant 0.000000e+00 : f32
    %19 = vector.broadcast %cst : f32 to vector<1x8x8xf32>
    %cst_5 = arith.constant 0.000000e+00 : f32
    %20 = vector.broadcast %cst_5 : f32 to vector<1x8x8xf32>
    %21 = vector.extract_strided_slice %0 {offsets = [0, 0, 0], sizes = [1, 1, 1], strides = [1, 1, 1]} : vector<1x8x1xf32> to vector<1x1x1xf32>
    %22 = vector.shape_cast %21 : vector<1x1x1xf32> to vector<1x1x1xf32>
    %23 = vector.broadcast %22 : vector<1x1x1xf32> to vector<1x8x8xf32>
    %24 = arith.select %4, %23, %19 : vector<1x8x8xi1>, vector<1x8x8xf32>
    %25 = vector.extract_strided_slice %2 {offsets = [0, 0, 0], sizes = [1, 1, 1], strides = [1, 1, 1]} : vector<1x8x1xf32> to vector<1x1x1xf32>
    %26 = vector.shape_cast %25 : vector<1x1x1xf32> to vector<1x1x1xf32>
    %27 = vector.broadcast %26 : vector<1x1x1xf32> to vector<1x8x8xf32>
    %28 = arith.select %4, %27, %20 : vector<1x8x8xi1>, vector<1x8x8xf32>
    %29 = vector.extract_strided_slice %0 {offsets = [0, 1, 0], sizes = [1, 1, 1], strides = [1, 1, 1]} : vector<1x8x1xf32> to vector<1x1x1xf32>
    %30 = vector.shape_cast %29 : vector<1x1x1xf32> to vector<1x1x1xf32>
    %31 = vector.broadcast %30 : vector<1x1x1xf32> to vector<1x8x8xf32>
    %32 = arith.select %6, %31, %24 : vector<1x8x8xi1>, vector<1x8x8xf32>
    %33 = vector.extract_strided_slice %2 {offsets = [0, 1, 0], sizes = [1, 1, 1], strides = [1, 1, 1]} : vector<1x8x1xf32> to vector<1x1x1xf32>
    %34 = vector.shape_cast %33 : vector<1x1x1xf32> to vector<1x1x1xf32>
    %35 = vector.broadcast %34 : vector<1x1x1xf32> to vector<1x8x8xf32>
    %36 = arith.select %6, %35, %28 : vector<1x8x8xi1>, vector<1x8x8xf32>
    %37 = vector.extract_strided_slice %0 {offsets = [0, 2, 0], sizes = [1, 1, 1], strides = [1, 1, 1]} : vector<1x8x1xf32> to vector<1x1x1xf32>
    %38 = vector.shape_cast %37 : vector<1x1x1xf32> to vector<1x1x1xf32>
    %39 = vector.broadcast %38 : vector<1x1x1xf32> to vector<1x8x8xf32>
    %40 = arith.select %8, %39, %32 : vector<1x8x8xi1>, vector<1x8x8xf32>
    %41 = vector.extract_strided_slice %2 {offsets = [0, 2, 0], sizes = [1, 1, 1], strides = [1, 1, 1]} : vector<1x8x1xf32> to vector<1x1x1xf32>
    %42 = vector.shape_cast %41 : vector<1x1x1xf32> to vector<1x1x1xf32>
    %43 = vector.broadcast %42 : vector<1x1x1xf32> to vector<1x8x8xf32>
    %44 = arith.select %8, %43, %36 : vector<1x8x8xi1>, vector<1x8x8xf32>
    %45 = vector.extract_strided_slice %0 {offsets = [0, 3, 0], sizes = [1, 1, 1], strides = [1, 1, 1]} : vector<1x8x1xf32> to vector<1x1x1xf32>
    %46 = vector.shape_cast %45 : vector<1x1x1xf32> to vector<1x1x1xf32>
    %47 = vector.broadcast %46 : vector<1x1x1xf32> to vector<1x8x8xf32>
    %48 = arith.select %10, %47, %40 : vector<1x8x8xi1>, vector<1x8x8xf32>
    %49 = vector.extract_strided_slice %2 {offsets = [0, 3, 0], sizes = [1, 1, 1], strides = [1, 1, 1]} : vector<1x8x1xf32> to vector<1x1x1xf32>
    %50 = vector.shape_cast %49 : vector<1x1x1xf32> to vector<1x1x1xf32>
    %51 = vector.broadcast %50 : vector<1x1x1xf32> to vector<1x8x8xf32>
    %52 = arith.select %10, %51, %44 : vector<1x8x8xi1>, vector<1x8x8xf32>
    %53 = vector.extract_strided_slice %0 {offsets = [0, 4, 0], sizes = [1, 1, 1], strides = [1, 1, 1]} : vector<1x8x1xf32> to vector<1x1x1xf32>
    %54 = vector.shape_cast %53 : vector<1x1x1xf32> to vector<1x1x1xf32>
    %55 = vector.broadcast %54 : vector<1x1x1xf32> to vector<1x8x8xf32>
    %56 = arith.select %12, %55, %48 : vector<1x8x8xi1>, vector<1x8x8xf32>
    %57 = vector.extract_strided_slice %2 {offsets = [0, 4, 0], sizes = [1, 1, 1], strides = [1, 1, 1]} : vector<1x8x1xf32> to vector<1x1x1xf32>
    %58 = vector.shape_cast %57 : vector<1x1x1xf32> to vector<1x1x1xf32>
    %59 = vector.broadcast %58 : vector<1x1x1xf32> to vector<1x8x8xf32>
    %60 = arith.select %12, %59, %52 : vector<1x8x8xi1>, vector<1x8x8xf32>
    %61 = vector.extract_strided_slice %0 {offsets = [0, 5, 0], sizes = [1, 1, 1], strides = [1, 1, 1]} : vector<1x8x1xf32> to vector<1x1x1xf32>
    %62 = vector.shape_cast %61 : vector<1x1x1xf32> to vector<1x1x1xf32>
    %63 = vector.broadcast %62 : vector<1x1x1xf32> to vector<1x8x8xf32>
    %64 = arith.select %14, %63, %56 : vector<1x8x8xi1>, vector<1x8x8xf32>
    %65 = vector.extract_strided_slice %2 {offsets = [0, 5, 0], sizes = [1, 1, 1], strides = [1, 1, 1]} : vector<1x8x1xf32> to vector<1x1x1xf32>
    %66 = vector.shape_cast %65 : vector<1x1x1xf32> to vector<1x1x1xf32>
    %67 = vector.broadcast %66 : vector<1x1x1xf32> to vector<1x8x8xf32>
    %68 = arith.select %14, %67, %60 : vector<1x8x8xi1>, vector<1x8x8xf32>
    %69 = vector.extract_strided_slice %0 {offsets = [0, 6, 0], sizes = [1, 1, 1], strides = [1, 1, 1]} : vector<1x8x1xf32> to vector<1x1x1xf32>
    %70 = vector.shape_cast %69 : vector<1x1x1xf32> to vector<1x1x1xf32>
    %71 = vector.broadcast %70 : vector<1x1x1xf32> to vector<1x8x8xf32>
    %72 = arith.select %16, %71, %64 : vector<1x8x8xi1>, vector<1x8x8xf32>
    %73 = vector.extract_strided_slice %2 {offsets = [0, 6, 0], sizes = [1, 1, 1], strides = [1, 1, 1]} : vector<1x8x1xf32> to vector<1x1x1xf32>
    %74 = vector.shape_cast %73 : vector<1x1x1xf32> to vector<1x1x1xf32>
    %75 = vector.broadcast %74 : vector<1x1x1xf32> to vector<1x8x8xf32>
    %76 = arith.select %16, %75, %68 : vector<1x8x8xi1>, vector<1x8x8xf32>
    %77 = vector.extract_strided_slice %0 {offsets = [0, 7, 0], sizes = [1, 1, 1], strides = [1, 1, 1]} : vector<1x8x1xf32> to vector<1x1x1xf32>
    %78 = vector.shape_cast %77 : vector<1x1x1xf32> to vector<1x1x1xf32>
    %79 = vector.broadcast %78 : vector<1x1x1xf32> to vector<1x8x8xf32>
    %80 = arith.select %18, %79, %72 : vector<1x8x8xi1>, vector<1x8x8xf32>
    %81 = vector.extract_strided_slice %2 {offsets = [0, 7, 0], sizes = [1, 1, 1], strides = [1, 1, 1]} : vector<1x8x1xf32> to vector<1x1x1xf32>
    %82 = vector.shape_cast %81 : vector<1x1x1xf32> to vector<1x1x1xf32>
    %83 = vector.broadcast %82 : vector<1x1x1xf32> to vector<1x8x8xf32>
    %84 = arith.select %18, %83, %76 : vector<1x8x8xi1>, vector<1x8x8xf32>
    %85 = vector.broadcast %2 : vector<1x8x1xf32> to vector<1x8x8xf32>
    %86 = arith.addf %85, %84 : vector<1x8x8xf32>
    %cst_6 = arith.constant 1.010000e+00 : f32
    %87 = vector.broadcast %cst_6 : f32 to vector<1x8x8xf32>
    %88 = arith.mulf %87, %86 : vector<1x8x8xf32>
    %89 = vector.broadcast %0 : vector<1x8x1xf32> to vector<1x8x8xf32>
    %90 = arith.addf %89, %80 : vector<1x8x8xf32>
    %91 = math.log %90 : vector<1x8x8xf32>
    %cst_7 = arith.constant 1.100000e+00 : f32
    %92 = vector.broadcast %cst_7 : f32 to vector<1x8x8xf32>
    %93 = arith.mulf %92, %91 : vector<1x8x8xf32>
    %94 = arith.subf %88, %93 : vector<1x8x8xf32>
    %95 = math.exp %94 : vector<1x8x8xf32>
    %cst_8 = arith.constant -0.135914087 : f32
    %96 = vector.broadcast %cst_8 : f32 to vector<1x8x8xf32>
    %97 = arith.mulf %96, %95 : vector<1x8x8xf32>
    %98 = math.exp %97 : vector<1x8x8xf32>
    %c0_9 = arith.constant 0 : index
    %c0_10 = arith.constant 0 : index
    %c0_11 = arith.constant 0 : index
    %99 = vector.load %arg3[%c0_9, %c0_10, %c0_11] : memref<1x8x8xf32, #tpu.memory_space<vmem>>, vector<1x8x8xf32>
    %100 = arith.addf %99, %98 : vector<1x8x8xf32>
    %c0_12 = arith.constant 0 : index
    %c0_13 = arith.constant 0 : index
    %c0_14 = arith.constant 0 : index
    %101 = vector.load %arg4[%c0_12, %c0_13, %c0_14] : memref<1x8x8xf32, #tpu.memory_space<vmem>>, vector<1x8x8xf32>
    tpu.vector_store %arg4[%c0_12, %c0_13, %c0_14], %100 {strides = array<i32>} : memref<1x8x8xf32, #tpu.memory_space<vmem>>, vector<1x8x8xf32>,
    return
  }
  func.func @transform_0(%arg0: i32) -> (i32, i32, i32) {
    %c0_i32 = arith.constant 0 : i32
    %c0_i32_0 = arith.constant 0 : i32
    %c0_i32_1 = arith.constant 0 : i32
    return %arg0, %c0_i32, %c0_i32_0 : i32, i32, i32
  }
  func.func @transform_1(%arg0: i32) -> (i32, i32, i32) {
    %c0_i32 = arith.constant 0 : i32
    %c0_i32_0 = arith.constant 0 : i32
    %c0_i32_1 = arith.constant 0 : i32
    return %arg0, %c0_i32, %c0_i32_0 : i32, i32, i32
  }
  func.func @transform_2(%arg0: i32) -> (i32, i32, i32) {
    %c0_i32 = arith.constant 0 : i32
    %c0_i32_0 = arith.constant 0 : i32
    %c0_i32_1 = arith.constant 0 : i32
    return %arg0, %c0_i32, %c0_i32_0 : i32, i32, i32
  }
  func.func @transform_3(%arg0: i32) -> (i32, i32, i32) {
    %c0_i32 = arith.constant 0 : i32
    %c0_i32_0 = arith.constant 0 : i32
    %c0_i32_1 = arith.constant 0 : i32
    return %arg0, %c0_i32, %c0_i32_0 : i32, i32, i32
  }
}

</mosaic_0001>

<llo_original>
// kernel: tpu_custom_call.1
$region0: #{tpu_custom_call.1}
  #allocation0 [shape = 'u32[]', space=smem, size = 0x4, offset = 0x4, fixed_abs, tag = 'smem constant byte address 0x4 - core index']
  #allocation1 [shape = 'u32[144,128]{1,0:T(1,128)}', space=vmem, size = 0x12000, scoped, tag = 'internal scratch']
  %s0 = inlined_call_operand.vmem [shape: s32[2,8,8], index: 0, kind: input, shape index: {}]
  %s1 = inlined_call_operand.vmem [shape: f32[2,8,1], index: 1, kind: input, shape index: {}]
  %s2 = inlined_call_operand.hbm [shape: f32[2,8,8], index: 2, kind: input, shape index: {}]
  %s3 = inlined_call_operand.hbm [shape: f32[2,8,8], index: 3, kind: output, shape index: {}]
  %s4 = sld [smem:[#allocation0]]
  $region49: #{tpu_custom_call.1} parent=0
    _
  %s6 = ssub.s32 1, %s4
  %s7 = scalar_select 0, %s6, %s4
  $region1: #{tpu_custom_call.1} parent=0
    #allocation2 [shape = 'u8[8192]{0}', space=vmem, size = 0x2000, scoped, tag = 'input window, operand 2']
    #allocation3 [shape = 's32[2]{0}', space=sflag, size = 0x8, scoped, tag = 'scoped memory for tpu_custom_call.1']
    #allocation4 [shape = 's32[2]{0}', space=sflag, size = 0x8, scoped, tag = 'scoped memory for tpu_custom_call.1']
    #allocation5 [shape = 'u8[8192]{0}', space=vmem, size = 0x2000, scoped, tag = 'output window, operand 0']
    %8 = vsyncpa [#allocation3], 0
    %s9 = scalar_lea.sflag [#allocation3], 1
    %10 = vsyncpa %s9, 0
    %11 = vsyncpa [#allocation4], 0
    %s12 = scalar_lea.sflag [#allocation4], 1
    %13 = vsyncpa %s12, 0
    loop: start=0, step=1, limit=4
    $region2: #{tpu_custom_call.1} parent=1 // loop_pre_header
      _
    $region3: #{tpu_custom_call.1} parent=1 // loop_header
      %s15 = sphi 0, %s19
      %p16 = scmp.ge.s32.totalorder %s15, 4
      %s25 = sphi 0, %s27
      %s28 = sphi 0, %s25
      %s29 = sphi 0, %s28
      %s45 = sphi 0, %s29
      %s51 = sphi 0, %s53
      %s54 = sphi 0, %s51
      %s55 = sphi 0, %s54
      %s71 = sphi 0, %s55
      %s77 = sphi 0, %s79
      %s80 = sphi 0, %s77
      %s81 = sphi 0, %s80
      %s97 = sphi 0, %s81
      %s103 = sphi 0, %s105
      %s106 = sphi 0, %s103
      %s107 = sphi 0, %s106
      %s123 = sphi 0, %s107
    $region4: #{tpu_custom_call.1} parent=1 // loop_header_branch
      %18 = sbr.rel (%p16) target = $region8
    $region5: #{tpu_custom_call.1} parent=1 // loop_body
      %s20 = ssub.s32 %s15, 1
      %s21 = ssub.s32 %s15, 2
      %s22 = sadd.s32 %s15, 1
      %s23 = ssub.s32 %s15, %s22
      %p24 = scmp.eq.s32.totalorder %s23, 0
      %s26 = sadd.s32 %s25, 1
      %s27 = scalar_select %p24, %s25, %s26
      %p30 = pneg %p24
      %p31 = scmp.eq.s32.totalorder %s15, 1
      %p32 = por %p30, %p31
      %p33 = scmp.ne.s32.totalorder %s25, %s28
      %p34 = scmp.eq.s32.totalorder %s15, 0
      %p35 = por %p33, %p34
      %p36 = scmp.ne.s32.totalorder %s25, %s28
      %p37 = scmp.eq.s32.totalorder %s20, 1
      %p38 = por %p36, %p37
      %p39 = scmp.ne.s32.totalorder %s28, %s29
      %p40 = scmp.eq.s32.totalorder %s20, 0
      %p41 = por %p39, %p40
      %p42 = scmp.ne.s32.totalorder %s28, %s29
      %p43 = scmp.eq.s32.totalorder %s21, 1
      %p44 = por %p42, %p43
      %p46 = scmp.ne.s32.totalorder %s29, %s45
      %p47 = scmp.eq.s32.totalorder %s21, 0
      %p48 = por %p46, %p47
      %s49 = ssub.s32 %s15, %s22
      %p50 = scmp.eq.s32.totalorder %s49, 0
      %s52 = sadd.s32 %s51, 1
      %s53 = scalar_select %p50, %s51, %s52
      %p56 = pneg %p50
      %p57 = scmp.eq.s32.totalorder %s15, 1
      %p58 = por %p56, %p57
      %p59 = scmp.ne.s32.totalorder %s51, %s54
      %p60 = scmp.eq.s32.totalorder %s15, 0
      %p61 = por %p59, %p60
      %p62 = scmp.ne.s32.totalorder %s51, %s54
      %p63 = scmp.eq.s32.totalorder %s20, 1
      %p64 = por %p62, %p63
      %p65 = scmp.ne.s32.totalorder %s54, %s55
      %p66 = scmp.eq.s32.totalorder %s20, 0
      %p67 = por %p65, %p66
      %p68 = scmp.ne.s32.totalorder %s54, %s55
      %p69 = scmp.eq.s32.totalorder %s21, 1
      %p70 = por %p68, %p69
      %p72 = scmp.ne.s32.totalorder %s55, %s71
      %p73 = scmp.eq.s32.totalorder %s21, 0
      %p74 = por %p72, %p73
      %s75 = ssub.s32 %s15, %s22
      %p76 = scmp.eq.s32.totalorder %s75, 0
      %s78 = sadd.s32 %s77, 1
      %s79 = scalar_select %p76, %s77, %s78
      %p82 = pneg %p76
      %p83 = scmp.eq.s32.totalorder %s15, 1
      %p84 = por %p82, %p83
      %p85 = scmp.ne.s32.totalorder %s77, %s80
      %p86 = scmp.eq.s32.totalorder %s15, 0
      %p87 = por %p85, %p86
      %p88 = scmp.ne.s32.totalorder %s77, %s80
      %p89 = scmp.eq.s32.totalorder %s20, 1
      %p90 = por %p88, %p89
      %p91 = scmp.ne.s32.totalorder %s80, %s81
      %p92 = scmp.eq.s32.totalorder %s20, 0
      %p93 = por %p91, %p92
      %p94 = scmp.ne.s32.totalorder %s80, %s81
      %p95 = scmp.eq.s32.totalorder %s21, 1
      %p96 = por %p94, %p95
      %p98 = scmp.ne.s32.totalorder %s81, %s97
      %p99 = scmp.eq.s32.totalorder %s21, 0
      %p100 = por %p98, %p99
      %s101 = ssub.s32 %s15, %s22
      %p102 = scmp.eq.s32.totalorder %s101, 0
      %s104 = sadd.s32 %s103, 1
      %s105 = scalar_select %p102, %s103, %s104
      %p108 = pneg %p102
      %p109 = scmp.eq.s32.totalorder %s15, 1
      %p110 = por %p108, %p109
      %p111 = scmp.ne.s32.totalorder %s103, %s106
      %p112 = scmp.eq.s32.totalorder %s15, 0
      %p113 = por %p111, %p112
      %p114 = scmp.ne.s32.totalorder %s103, %s106
      %p115 = scmp.eq.s32.totalorder %s20, 1
      %p116 = por %p114, %p115
      %p117 = scmp.ne.s32.totalorder %s106, %s107
      %p118 = scmp.eq.s32.totalorder %s20, 0
      %p119 = por %p117, %p118
      %p120 = scmp.ne.s32.totalorder %s106, %s107
      %p121 = scmp.eq.s32.totalorder %s21, 1
      %p122 = por %p120, %p121
      %p124 = scmp.ne.s32.totalorder %s107, %s123
      %p125 = scmp.eq.s32.totalorder %s21, 0
      %p126 = por %p124, %p125
      %p127 = scmp.le.s32.totalorder 1, %s15
      %p128 = scmp.lt.s32.totalorder %s15, 3
      %p129 = pnand %p127, %p128
      %p130 = pneg %p129
      // Predicated region
      $region9: #{tpu_custom_call.1} parent=5 // pred_check
        _
      $region10: #{tpu_custom_call.1} parent=5 // pred_check_branch
        %132 = sbr.rel (%p129) target = $region12
      $region11: #{tpu_custom_call.1} parent=5 // pred_region
        %s133 = ssub.s32 %s15, 1
      $region12: #{tpu_custom_call.1} parent=5 // pred_fallthru
        _
      %p134 = scmp.lt.s32.totalorder %s15, 2
      // Predicated region
      $region13: #{tpu_custom_call.1} parent=5 // pred_check
        %p135 = pneg %p134
      $region14: #{tpu_custom_call.1} parent=5 // pred_check_branch
        %137 = sbr.rel (%p135) target = $region16
      $region15: #{tpu_custom_call.1} parent=5 // pred_region
        // Predicated region
        $region17: #{tpu_custom_call.1} parent=15 // pred_check
          %p138 = pneg %p35
        $region18: #{tpu_custom_call.1} parent=15 // pred_check_branch
          %140 = sbr.rel (%p138) target = $region20
        $region19: #{tpu_custom_call.1} parent=15 // pred_region
          %p141 = scmp.lt.s32.totalorder %s15, 1
          %s142 = scalar_select %p141, %s15, 1
          %s143 = smul.addr %s142, 8
          %s144 = scalar_lea.vmem %s0, %s143
        $region20: #{tpu_custom_call.1} parent=15 // pred_fallthru
          _
        // Predicated region
        $region21: #{tpu_custom_call.1} parent=15 // pred_check
          %p145 = pneg %p61
        $region22: #{tpu_custom_call.1} parent=15 // pred_check_branch
          %147 = sbr.rel (%p145) target = $region24
        $region23: #{tpu_custom_call.1} parent=15 // pred_region
          %p148 = scmp.lt.s32.totalorder %s15, 1
          %s149 = scalar_select %p148, %s15, 1
          %s150 = smul.addr %s149, 8
          %s151 = scalar_lea.vmem %s1, %s150
        $region24: #{tpu_custom_call.1} parent=15 // pred_fallthru
          _
        // Predicated region
        $region25: #{tpu_custom_call.1} parent=15 // pred_check
          %p152 = pneg %p87
        $region26: #{tpu_custom_call.1} parent=15 // pred_check_branch
          %154 = sbr.rel (%p152) target = $region28
        $region27: #{tpu_custom_call.1} parent=15 // pred_region
          %s155 = sand.u32 %s77, 1
          %s156 = scalar_lea.sflag [#allocation3], %s155
          %s157 = sand.u32 %s77, 1
          %s158 = smul.addr %s157, 8
          %s159 = scalar_lea.vmem [#allocation2], %s158
          %s161 = ssub.s32 128, 128
          %162 = vsyncadd %s156, %s161
          %s163 = smul.addr %s15, 128
          %s164 = scalar_lea.hbm %s2, %s163
          %s166 = sshll.u32 %s159, 4
          %s167 = int_to_ptr.vmem [resolvable:$true] %s166
          %169 = dma.hbm_to_vmem [thread:$0]  %s164, 128, %s167, %s156
        $region28: #{tpu_custom_call.1} parent=15 // pred_fallthru
          _
      $region16: #{tpu_custom_call.1} parent=5 // pred_fallthru
        _
      %p170 = scmp.le.s32.totalorder 1, %s15
      %p171 = scmp.lt.s32.totalorder %s15, 3
      %p172 = pnand %p170, %p171
      %p173 = pneg %p172
      // Predicated region
      $region29: #{tpu_custom_call.1} parent=5 // pred_check
        _
      $region30: #{tpu_custom_call.1} parent=5 // pred_check_branch
        %175 = sbr.rel (%p172) target = $region32
      $region31: #{tpu_custom_call.1} parent=5 // pred_region
        %s176 = ssub.s32 %s15, 1
        %s177 = sand.u32 %s80, 1
        %s178 = scalar_lea.sflag [#allocation3], %s177
        %s179 = sand.u32 %s80, 1
        %s180 = smul.addr %s179, 8
        %s181 = scalar_lea.vmem [#allocation2], %s180
        // Predicated region
        $region33: #{tpu_custom_call.1} parent=31 // pred_check
          %p182 = pneg %p93
        $region34: #{tpu_custom_call.1} parent=31 // pred_check_branch
          %184 = sbr.rel (%p182) target = $region36
        $region35: #{tpu_custom_call.1} parent=31 // pred_region
          %185 = dma.done %s178, 128
        $region36: #{tpu_custom_call.1} parent=31 // pred_fallthru
          _
        %p186 = scmp.lt.s32.totalorder %s20, 1
        %s187 = scalar_select %p186, %s20, 1
        %s188 = smul.addr %s187, 8
        %s189 = scalar_lea.vmem %s0, %s188
        %p190 = pneg %p41
        %p191 = pneg %p38
        %p192 = scmp.lt.s32.totalorder %s20, 1
        %s193 = scalar_select %p192, %s20, 1
        %s194 = smul.addr %s193, 8
        %s195 = scalar_lea.vmem %s1, %s194
        %p196 = pneg %p67
        %p197 = pneg %p64
        %s198 = sand.u32 %s80, 1
        %s199 = scalar_lea.sflag [#allocation3], %s198
        %s200 = sand.u32 %s80, 1
        %s201 = smul.addr %s200, 8
        %s202 = scalar_lea.vmem [#allocation2], %s201
        %p203 = pneg %p93
        %p204 = pneg %p90
        %p205 = pneg %p119
        %p206 = pneg %p116
        %s207 = sand.u32 %s106, 1
        %s208 = scalar_lea.sflag [#allocation4], %s207
        %s209 = sand.u32 %s106, 1
        %s210 = smul.addr %s209, 8
        %s211 = scalar_lea.vmem [#allocation5], %s210
        %p212 = scmp.lt.s32.totalorder %s20, 1
        %s213 = scalar_select %p212, %s20, 1
        %s214 = smul.addr %s213, 8
        %s215 = scalar_lea.vmem %s0, %s214
        %p216 = scmp.lt.s32.totalorder %s20, 1
        %s217 = scalar_select %p216, %s20, 1
        %s218 = smul.addr %s217, 8
        %s219 = scalar_lea.vmem %s1, %s218
        %v220 = vld [vmem:[%s219] sm:$0xff]
        %v221 = vld [vmem:[%s215] sm:$0xff]
        %v222 = vlog2.pop %v220
        %v223 = vmul.f32 %v222, 0.6931472
        %vm224 = vcmp.eq.s32.totalorder %v221, 0
        %vm225 = vcmp.eq.s32.totalorder %v221, 1
        %vm226 = vcmp.eq.s32.totalorder %v221, 2
        %vm227 = vcmp.eq.s32.totalorder %v221, 3
        %vm228 = vcmp.eq.s32.totalorder %v221, 4
        %vm229 = vcmp.eq.s32.totalorder %v221, 5
        %vm230 = vcmp.eq.s32.totalorder %v221, 6
        %vm231 = vcmp.eq.s32.totalorder %v221, 7
        %s233 = vtos %v220
        %v234 = vstv %s233
        %v236 = vsel %vm224, %v234, 0.0
        %s238 = vtos %v223
        %v239 = vstv %s238
        %v241 = vsel %vm224, %v239, 0.0
        %v242 = vrot.slane %v220, 1
        %s243 = vtos %v242
        %v244 = vstv %s243
        %v246 = vsel %vm225, %v244, %v236
        %v247 = vrot.slane %v223, 1
        %s248 = vtos %v247
        %v249 = vstv %s248
        %v251 = vsel %vm225, %v249, %v241
        %v252 = vrot.slane %v220, 2
        %s253 = vtos %v252
        %v254 = vstv %s253
        %v256 = vsel %vm226, %v254, %v246
        %v257 = vrot.slane %v223, 2
        %s258 = vtos %v257
        %v259 = vstv %s258
        %v261 = vsel %vm226, %v259, %v251
        %v262 = vrot.slane %v220, 3
        %s263 = vtos %v262
        %v264 = vstv %s263
        %v266 = vsel %vm227, %v264, %v256
        %v267 = vrot.slane %v223, 3
        %s268 = vtos %v267
        %v269 = vstv %s268
        %v271 = vsel %vm227, %v269, %v261
        %v272 = vrot.slane %v220, 4
        %s273 = vtos %v272
        %v274 = vstv %s273
        %v276 = vsel %vm228, %v274, %v266
        %v277 = vrot.slane %v223, 4
        %s278 = vtos %v277
        %v279 = vstv %s278
        %v281 = vsel %vm228, %v279, %v271
        %v282 = vrot.slane %v220, 5
        %s283 = vtos %v282
        %v284 = vstv %s283
        %v286 = vsel %vm229, %v284, %v276
        %v287 = vrot.slane %v223, 5
        %s288 = vtos %v287
        %v289 = vstv %s288
        %v291 = vsel %vm229, %v289, %v281
        %v292 = vrot.slane %v220, 6
        %s293 = vtos %v292
        %v294 = vstv %s293
        %v296 = vsel %vm230, %v294, %v286
        %v297 = vrot.slane %v223, 6
        %s298 = vtos %v297
        %v299 = vstv %s298
        %v301 = vsel %vm230, %v299, %v291
        %v302 = vrot.slane %v220, 7
        %s303 = vtos %v302
        %v304 = vstv %s303
        %v306 = vsel %vm231, %v304, %v296
        %v307 = vrot.slane %v223, 7
        %s308 = vtos %v307
        %v309 = vstv %s308
        %v311 = vsel %vm231, %v309, %v301
        %312 = vset.pattern.permute.xlu0 0
        %313 = vperm.xlu0 %312, %v223
        %v314 = vpop.permute.xlu0 %313
        %v316 = vadd.f32 %v314, %v311
        %v317 = vmul.f32 %v316, 1.01
        %318 = vset.pattern.permute.xlu0 0
        %319 = vperm.xlu0 %318, %v220
        %v320 = vpop.permute.xlu0 %319
        %v322 = vadd.f32 %v320, %v306
        %v323 = vlog2.pop %v322
        %v324 = vmul.f32 %v323, 0.6931472
        %v325 = vmul.f32 %v324, 1.1
        %v326 = vsub.f32 %v317, %v325
        %v327 = vmul.f32 %v326, 1.442695
        %v328 = vpow.pop %v327
        %v329 = vmul.f32 %v328, -0.13591409
        %v330 = vmul.f32 %v329, 1.442695
        %v331 = vpow.pop %v330
        %v332 = vld [vmem:[%s181] sm:$0xff]
        %v333 = vadd.f32 %v332, %v331
        %vm334 = vcmask 64512
        %335 = vst.msk [vmem:[%s211] sm:$0xff] %vm334, %v333
        %s336 = sand.u32 %s106, 1
        %s337 = scalar_lea.sflag [#allocation4], %s336
        %s338 = sand.u32 %s106, 1
        %s339 = smul.addr %s338, 8
        %s340 = scalar_lea.vmem [#allocation5], %s339
        // Predicated region
        $region37: #{tpu_custom_call.1} parent=31 // pred_check
          %p341 = pneg %p116
        $region38: #{tpu_custom_call.1} parent=31 // pred_check_branch
          %343 = sbr.rel (%p341) target = $region40
        $region39: #{tpu_custom_call.1} parent=31 // pred_region
          %s345 = ssub.s32 128, 128
          %346 = vsyncadd %s337, %s345
          %s347 = smul.addr %s20, 128
          %s348 = scalar_lea.hbm %s3, %s347
          %s350 = sshll.u32 %s340, 4
          %s351 = int_to_ptr.vmem [resolvable:$true] %s350
          %353 = dma.vmem_to_hbm [thread:$0]  %s351, 128, %s348, %s337
        $region40: #{tpu_custom_call.1} parent=31 // pred_fallthru
          _
      $region32: #{tpu_custom_call.1} parent=5 // pred_fallthru
        _
      %p354 = scmp.le.s32.totalorder 2, %s15
      // Predicated region
      $region41: #{tpu_custom_call.1} parent=5 // pred_check
        %p355 = pneg %p354
      $region42: #{tpu_custom_call.1} parent=5 // pred_check_branch
        %357 = sbr.rel (%p355) target = $region44
      $region43: #{tpu_custom_call.1} parent=5 // pred_region
        %s358 = ssub.s32 %s15, 2
        // Predicated region
        $region45: #{tpu_custom_call.1} parent=43 // pred_check
          %p359 = pneg %p122
        $region46: #{tpu_custom_call.1} parent=43 // pred_check_branch
          %361 = sbr.rel (%p359) target = $region48
        $region47: #{tpu_custom_call.1} parent=43 // pred_region
          %s362 = sand.u32 %s107, 1
          %s363 = scalar_lea.sflag [#allocation4], %s362
          %s364 = sand.u32 %s107, 1
          %s365 = smul.addr %s364, 8
          %s366 = scalar_lea.vmem [#allocation5], %s365
          %367 = dma.done %s363, 128
        $region48: #{tpu_custom_call.1} parent=43 // pred_fallthru
          _
      $region44: #{tpu_custom_call.1} parent=5 // pred_fallthru
        _
    $region6: #{tpu_custom_call.1} parent=1 // loop_footer
      %s19 = sadd.s32 1, %s15
    $region7: #{tpu_custom_call.1} parent=1 // loop_footer_branch
      %14 = sbr.rel target = $region3
    $region8: #{tpu_custom_call.1} parent=1 // loop_exit
      _
    %368 = vsyncpa [#allocation3], 1
    %s369 = scalar_lea.sflag [#allocation3], 1
    %370 = vsyncpa %s369, 1
    %371 = vsyncpa [#allocation4], 1
    %s372 = scalar_lea.sflag [#allocation4], 1
    %373 = vsyncpa %s372, 1

</llo_original>
